<compile_context>
chip_gen: v7x
topology: tpu7x:2x2x1
jax: 0.10.0
libtpu: 0.0.40
codegen_flags: <defaults>
</compile_context>

<pallas_src>
import functools

import jax
import jax.numpy as jnp
from jax import lax
from jax.experimental import pallas as pl
from jax.experimental.pallas import tpu as pltpu

_LANES = 128
_TARGET_BLOCK_BYTES = 4 << 20  # ~4 MiB per input block per step


def _sublane_multiple(dtype) -> int:
    """Row granularity of a packed (sublane, lane) tile: 8/16/32 for 4/2/1-byte dtypes."""
    itemsize = jnp.dtype(dtype).itemsize
    return max(8, 32 // int(itemsize))


def _hinge_partial_kernel(m_ref, p_ref, n_ref, partial_ref, *, total_rows, tile_rows):
    # Upcast to f32 so low-precision inputs keep the bandwidth win but the
    # subtract/accumulate stays exact enough.
    m = m_ref[...].astype(jnp.float32)
    p = p_ref[...].astype(jnp.float32)
    n = n_ref[...].astype(jnp.float32)

    hinge = jnp.maximum(n - p + m, 0.0)

    if total_rows is not None:
        # Last block is partial: Pallas pads it with garbage rows -> mask them.
        row = lax.broadcasted_iota(jnp.int32, (tile_rows, 1), 0)
        row = row + pl.program_id(0) * tile_rows
        hinge = jnp.where(row < total_rows, hinge, 0.0)

    # Per-lane partial sum; each grid step owns its own (1, 128) output block,
    # so the single grid axis is fully parallel (megacore-friendly).
    partial_ref[...] = jnp.sum(hinge, axis=0, keepdims=True)


def pairwise_loss(adaptive_margin, pos, neg, *, max_tile_rows=None):
    """sum(max(-pos + neg + adaptive_margin, 0)) via a Pallas TPU kernel."""
    assert adaptive_margin.shape == pos.shape == neg.shape

    total = int(pos.size)
    if total == 0:
        return jnp.zeros((), jnp.float32)

    flats = [x.reshape(-1) for x in (adaptive_margin, pos, neg)]

    # Aligned body: largest prefix that is a whole number of 128-lane rows.
    main_total = (total // _LANES) * _LANES
    tail = total - main_total

    # Sub-128-element ragged tail: handled in plain JAX (reads < 128 elements
    # per input) instead of materializing padded full-array copies.
    tail_loss = jnp.zeros((), jnp.float32)
    if tail:
        m_t, p_t, n_t = (
            lax.slice(f, (main_total,), (total,)).astype(jnp.float32) for f in flats
        )
        tail_loss = jnp.sum(jnp.maximum(n_t - p_t + m_t, 0.0))

    if main_total == 0:
        return tail_loss

    if tail:
        flats = [lax.slice(f, (0,), (main_total,)) for f in flats]

    rows = main_total // _LANES
    mats = [f.reshape(rows, _LANES) for f in flats]  # metadata-only reshape

    itemsizes = [jnp.dtype(m.dtype).itemsize for m in mats]
    sub = max(_sublane_multiple(m.dtype) for m in mats)

    if max_tile_rows is None:
        # ~4 MiB per block of the widest input: per-step DMA dwarfs the
        # ~0.35 us grid-step overhead on v5e/v6e/v7x alike.
        max_tile_rows = _TARGET_BLOCK_BYTES // (_LANES * max(itemsizes))
    max_tile_rows = max(sub, (int(max_tile_rows) // sub) * sub)

    if rows <= max_tile_rows:
        tile_rows = rows  # single full-extent block; no divisibility constraint
        num_tiles = 1
        mask_rows = None
    else:
        tile_rows = max_tile_rows
        num_tiles = -(-rows // tile_rows)
        mask_rows = rows if (rows % tile_rows) != 0 else None  # mask only if partial

    # Double-buffered footprint: (3 inputs) x (2 buffers) x block + headroom,
    # capped generation-aware (v7x has only 64 MiB VMEM per TensorCore).
    block_bytes = tile_rows * _LANES * sum(itemsizes)
    needed = 2 * block_bytes + (2 << 20)
    try:
        vmem_cap = int(pltpu.get_tpu_info().vmem_capacity_bytes)
    except Exception:
        vmem_cap = 64 << 20
    vmem_limit = int(min(max(needed, 16 << 20), (3 * vmem_cap) // 4))

    cost = pl.CostEstimate(
        flops=4 * rows * _LANES,  # sub + add + max + partial-sum add
        transcendentals=0,
        bytes_accessed=rows * _LANES * sum(itemsizes) + num_tiles * _LANES * 4,
    )

    in_spec = pl.BlockSpec((tile_rows, _LANES), lambda i: (i, 0))
    kernel = functools.partial(
        _hinge_partial_kernel, total_rows=mask_rows, tile_rows=tile_rows
    )

    partials = pl.pallas_call(
        kernel,
        out_shape=jax.ShapeDtypeStruct((num_tiles, _LANES), jnp.float32),
        grid_spec=pltpu.PrefetchScalarGridSpec(
            num_scalar_prefetch=0,
            grid=(num_tiles,),
            in_specs=[in_spec, in_spec, in_spec],
            out_specs=pl.BlockSpec((1, _LANES), lambda i: (i, 0)),
        ),
        compiler_params=pltpu.CompilerParams(
            # TODO(synk): on v7x, pltpu.CORE_PARALLEL may be needed to shard this
            # axis across both TensorCores; "parallel" is the safe choice everywhere.
            dimension_semantics=("parallel",),
            vmem_limit_bytes=vmem_limit,
        ),
        cost_estimate=cost,
    )(*mats)

    # Tiny final collapse of (num_tiles, 128) partials outside the kernel.
    return jnp.sum(partials) + tail_loss


def _ref_loss(adaptive_margin, pos, neg):
    m = adaptive_margin.astype(jnp.float32)
    p = pos.astype(jnp.float32)
    n = neg.astype(jnp.float32)
    return jnp.sum(jnp.maximum(-p + n + m, 0.0))


if __name__ == "__main__":
    key = jax.random.PRNGKey(0)

    # 1) Aligned case: 16 "pairs" x 256 scores (total multiple of 128; no copies).
    k_m, k_p, k_n, key = jax.random.split(key, 4)
    M, N = 16, 256
    am = jax.random.uniform(k_m, (M, N), dtype=jnp.float32)
    pos = jax.random.normal(k_p, (M, N), dtype=jnp.float32)
    neg = jax.random.normal(k_n, (M, N), dtype=jnp.float32)
    loss = pairwise_loss(am, pos, neg)
    jax.block_until_ready(loss)
    ref = _ref_loss(am, pos, neg)
    assert jnp.allclose(loss, ref, rtol=1e-5, atol=1e-4), (loss, ref)

    # 2) Ragged (non-multiple-of-128) case: exercises the pure-JAX tail path.
    k_m, k_p, k_n, key = jax.random.split(key, 4)
    M2, N2 = 7, 100
    am2 = jax.random.uniform(k_m, (M2, N2), dtype=jnp.float32)
    pos2 = jax.random.normal(k_p, (M2, N2), dtype=jnp.float32)
    neg2 = jax.random.normal(k_n, (M2, N2), dtype=jnp.float32)
    loss2 = pairwise_loss(am2, pos2, neg2)
    jax.block_until_ready(loss2)
    ref2 = _ref_loss(am2, pos2, neg2)
    assert jnp.allclose(loss2, ref2, rtol=1e-5, atol=1e-4), (loss2, ref2)

    # 3) Multi-tile case with a partial (masked) final block.
    k_m, k_p, k_n, key = jax.random.split(key, 4)
    M3, N3 = 40, 128  # rows=40, tile_rows=16 -> 3 tiles, last tile half-valid
    am3 = jax.random.uniform(k_m, (M3, N3), dtype=jnp.float32)
    pos3 = jax.random.normal(k_p, (M3, N3), dtype=jnp.float32)
    neg3 = jax.random.normal(k_n, (M3, N3), dtype=jnp.float32)
    loss3 = pairwise_loss(am3, pos3, neg3, max_tile_rows=16)
    jax.block_until_ready(loss3)
    ref3 = _ref_loss(am3, pos3, neg3)
    assert jnp.allclose(loss3, ref3, rtol=1e-5, atol=1e-4), (loss3, ref3)

    # 4) bf16 inputs: in-kernel f32 upcast path + dtype-aware row granularity.
    k_m, k_p, k_n, key = jax.random.split(key, 4)
    M4, N4 = 8, 256
    am4 = jax.random.uniform(k_m, (M4, N4), dtype=jnp.float32).astype(jnp.bfloat16)
    pos4 = jax.random.normal(k_p, (M4, N4), dtype=jnp.float32).astype(jnp.bfloat16)
    neg4 = jax.random.normal(k_n, (M4, N4), dtype=jnp.float32).astype(jnp.bfloat16)
    loss4 = pairwise_loss(am4, pos4, neg4)
    jax.block_until_ready(loss4)
    ref4 = _ref_loss(am4, pos4, neg4)
    assert jnp.allclose(loss4, ref4, rtol=1e-3, atol=1e-2), (loss4, ref4)

    print("KERNEL_OK")
</pallas_src>

<mosaic_0001>
module attributes {stable_mosaic.version = 11 : i64} {
  func.func @_hinge_partial_kernel(%arg0: i32, %arg1: memref<32x128xf32, #tpu.memory_space<vmem>>, %arg2: memref<32x128xf32, #tpu.memory_space<vmem>>, %arg3: memref<32x128xf32, #tpu.memory_space<vmem>>, %arg4: memref<1x128xf32, #tpu.memory_space<vmem>>) attributes {dimension_semantics = [#tpu.dimension_semantics<parallel>], iteration_bounds = array<i64: 1>, scalar_prefetch = 0 : i64, scratch_operands = 0 : i64, tpu.core_type = #tpu.core_type<tc>, window_params = [{transform_indices = @transform_0, window_bounds = array<i64: 32, 128>}, {transform_indices = @transform_1, window_bounds = array<i64: 32, 128>}, {transform_indices = @transform_2, window_bounds = array<i64: 32, 128>}, {transform_indices = @transform_3, window_bounds = array<i64: 1, 128>}]} {
    %c0 = arith.constant 0 : index
    %c0_0 = arith.constant 0 : index
    %0 = vector.load %arg1[%c0, %c0_0] : memref<32x128xf32, #tpu.memory_space<vmem>>, vector<32x128xf32>
    %c0_1 = arith.constant 0 : index
    %c0_2 = arith.constant 0 : index
    %1 = vector.load %arg2[%c0_1, %c0_2] : memref<32x128xf32, #tpu.memory_space<vmem>>, vector<32x128xf32>
    %c0_3 = arith.constant 0 : index
    %c0_4 = arith.constant 0 : index
    %2 = vector.load %arg3[%c0_3, %c0_4] : memref<32x128xf32, #tpu.memory_space<vmem>>, vector<32x128xf32>
    %3 = arith.subf %2, %1 : vector<32x128xf32>
    %4 = arith.addf %3, %0 : vector<32x128xf32>
    %cst = arith.constant 0.000000e+00 : f32
    %5 = vector.broadcast %cst : f32 to vector<32x128xf32>
    %6 = arith.maximumf %4, %5 : vector<32x128xf32>
    %cst_5 = arith.constant dense<0.000000e+00> : vector<128xf32>
    %7 = vector.multi_reduction <add>, %6, %cst_5 [0] : vector<32x128xf32> to vector<128xf32>
    %8 = vector.shape_cast %7 : vector<128xf32> to vector<1x128xf32>
    %c0_6 = arith.constant 0 : index
    %c0_7 = arith.constant 0 : index
    %9 = vector.load %arg4[%c0_6, %c0_7] : memref<1x128xf32, #tpu.memory_space<vmem>>, vector<1x128xf32>
    tpu.vector_store %arg4[%c0_6, %c0_7], %8 {strides = array<i32>} : memref<1x128xf32, #tpu.memory_space<vmem>>, vector<1x128xf32>,
    return
  }
  func.func @transform_0(%arg0: i32) -> (i32, i32) {
    %c0_i32 = arith.constant 0 : i32
    %c0_i32_0 = arith.constant 0 : i32
    return %arg0, %c0_i32 : i32, i32
  }
  func.func @transform_1(%arg0: i32) -> (i32, i32) {
    %c0_i32 = arith.constant 0 : i32
    %c0_i32_0 = arith.constant 0 : i32
    return %arg0, %c0_i32 : i32, i32
  }
  func.func @transform_2(%arg0: i32) -> (i32, i32) {
    %c0_i32 = arith.constant 0 : i32
    %c0_i32_0 = arith.constant 0 : i32
    return %arg0, %c0_i32 : i32, i32
  }
  func.func @transform_3(%arg0: i32) -> (i32, i32) {
    %c0_i32 = arith.constant 0 : i32
    %c0_i32_0 = arith.constant 0 : i32
    return %arg0, %c0_i32 : i32, i32
  }
}

</mosaic_0001>

<llo_original>
// kernel: tpu_custom_call.1
$region0: #{tpu_custom_call.1}
  #allocation0 [shape = 'u32[]', space=smem, size = 0x4, offset = 0x4, fixed_abs, tag = 'smem constant byte address 0x4 - core index']
  #allocation1 [shape = 'u32[144,128]{1,0:T(1,128)}', space=vmem, size = 0x12000, scoped, tag = 'internal scratch']
  %s0 = inlined_call_operand.hbm [shape: f32[32,128], index: 0, kind: input, shape index: {}]
  %s1 = inlined_call_operand.hbm [shape: f32[32,128], index: 1, kind: input, shape index: {}]
  %s2 = inlined_call_operand.hbm [shape: f32[32,128], index: 2, kind: input, shape index: {}]
  %s3 = inlined_call_operand.hbm [shape: f32[1,128], index: 3, kind: output, shape index: {}]
  %s4 = sld [smem:[#allocation0]]
  $region34: #{tpu_custom_call.1} parent=0
    _
  %s6 = ssub.s32 1, %s4
  %s7 = scalar_select 0, %s6, %s4
  $region1: #{tpu_custom_call.1} parent=0
    #allocation2 [shape = 'u8[16384]{0}', space=vmem, size = 0x4000, scoped, tag = 'input window, operand 0, single buffered']
    #allocation3 [shape = 's32[1]{0}', space=sflag, size = 0x4, scoped, tag = 'scoped memory for tpu_custom_call.1']
    #allocation4 [shape = 's32[1]{0}', space=sflag, size = 0x4, scoped, tag = 'scoped memory for tpu_custom_call.1']
    #allocation5 [shape = 'u8[16384]{0}', space=vmem, size = 0x4000, scoped, tag = 'input window, operand 1, single buffered']
    #allocation6 [shape = 's32[1]{0}', space=sflag, size = 0x4, scoped, tag = 'scoped memory for tpu_custom_call.1']
    #allocation7 [shape = 'u8[16384]{0}', space=vmem, size = 0x4000, scoped, tag = 'input window, operand 2, single buffered']
    #allocation8 [shape = 'u8[512]{0}', space=vmem, size = 0x400, scoped, tag = 'output window, operand 0, single buffered']
    %8 = vsyncpa [#allocation3], 0
    %9 = vsyncpa [#allocation6], 0
    %10 = vsyncpa [#allocation4], 0
    // Predicated region
    $region2: #{tpu_custom_call.1} parent=1 // pred_check
      _
    $region3: #{tpu_custom_call.1} parent=1 // pred_check_branch
      %12 = sbr.rel (0) target = $region5
    $region4: #{tpu_custom_call.1} parent=1 // pred_region
      %s14 = ssub.s32 512, 512
      %15 = vsyncadd [#allocation3], %s14
      %s16 = sshll.u32 [#allocation2], 4
      %s17 = int_to_ptr.vmem [resolvable:$true] %s16
      %22 = dma.hbm_to_vmem [thread:$0]  %s0, 512, %s17, [#allocation3], 128, 128, 8
    $region5: #{tpu_custom_call.1} parent=1 // pred_fallthru
      _
    // Predicated region
    $region6: #{tpu_custom_call.1} parent=1 // pred_check
      _
    $region7: #{tpu_custom_call.1} parent=1 // pred_check_branch
      %24 = sbr.rel (0) target = $region9
    $region8: #{tpu_custom_call.1} parent=1 // pred_region
      %s26 = ssub.s32 512, 512
      %27 = vsyncadd [#allocation6], %s26
      %s28 = sshll.u32 [#allocation5], 4
      %s29 = int_to_ptr.vmem [resolvable:$true] %s28
      %34 = dma.hbm_to_vmem [thread:$0]  %s1, 512, %s29, [#allocation6], 128, 128, 8
    $region9: #{tpu_custom_call.1} parent=1 // pred_fallthru
      _
    // Predicated region
    $region10: #{tpu_custom_call.1} parent=1 // pred_check
      _
    $region11: #{tpu_custom_call.1} parent=1 // pred_check_branch
      %36 = sbr.rel (0) target = $region13
    $region12: #{tpu_custom_call.1} parent=1 // pred_region
      %s38 = ssub.s32 512, 512
      %39 = vsyncadd [#allocation6], %s38
      %s40 = sshll.u32 [#allocation7], 4
      %s41 = int_to_ptr.vmem [resolvable:$true] %s40
      %46 = dma.hbm_to_vmem [thread:$0]  %s2, 512, %s41, [#allocation6], 128, 128, 8
    $region13: #{tpu_custom_call.1} parent=1 // pred_fallthru
      _
    // Predicated region
    $region14: #{tpu_custom_call.1} parent=1 // pred_check
      _
    $region15: #{tpu_custom_call.1} parent=1 // pred_check_branch
      %48 = sbr.rel (0) target = $region17
    $region16: #{tpu_custom_call.1} parent=1 // pred_region
      %49 = dma.done [#allocation3], 512
    $region17: #{tpu_custom_call.1} parent=1 // pred_fallthru
      _
    // Predicated region
    $region18: #{tpu_custom_call.1} parent=1 // pred_check
      _
    $region19: #{tpu_custom_call.1} parent=1 // pred_check_branch
      %51 = sbr.rel (0) target = $region21
    $region20: #{tpu_custom_call.1} parent=1 // pred_region
      %52 = dma.done [#allocation6], 512
    $region21: #{tpu_custom_call.1} parent=1 // pred_fallthru
      _
    // Predicated region
    $region22: #{tpu_custom_call.1} parent=1 // pred_check
      _
    $region23: #{tpu_custom_call.1} parent=1 // pred_check_branch
      %54 = sbr.rel (0) target = $region25
    $region24: #{tpu_custom_call.1} parent=1 // pred_region
      %55 = dma.done [#allocation6], 512
    $region25: #{tpu_custom_call.1} parent=1 // pred_fallthru
      _
    %v56 = vld [vmem:[#allocation2] sm:$0xff]
    %v57 = vld [vmem:[#allocation2 + $0x8] sm:$0xff]
    %v58 = vld [vmem:[#allocation2 + $0x10] sm:$0xff]
    %v59 = vld [vmem:[#allocation2 + $0x18] sm:$0xff]
    %v60 = vld [vmem:[#allocation5] sm:$0xff]
    %v61 = vld [vmem:[#allocation5 + $0x8] sm:$0xff]
    %v62 = vld [vmem:[#allocation5 + $0x10] sm:$0xff]
    %v63 = vld [vmem:[#allocation5 + $0x18] sm:$0xff]
    %v64 = vld [vmem:[#allocation7] sm:$0xff]
    %v65 = vld [vmem:[#allocation7 + $0x8] sm:$0xff]
    %v66 = vld [vmem:[#allocation7 + $0x10] sm:$0xff]
    %v67 = vld [vmem:[#allocation7 + $0x18] sm:$0xff]
    %v68 = vsub.f32 %v64, %v60
    %v69 = vsub.f32 %v65, %v61
    %v70 = vsub.f32 %v66, %v62
    %v71 = vsub.f32 %v67, %v63
    %v72 = vadd.f32 %v68, %v56
    %v73 = vadd.f32 %v69, %v57
    %v74 = vadd.f32 %v70, %v58
    %v75 = vadd.f32 %v71, %v59
    %v76 = vmax.f32 %v72, 0.0
    %v77 = vmax.f32 %v73, 0.0
    %v78 = vmax.f32 %v74, 0.0
    %v79 = vmax.f32 %v75, 0.0
    %v80 = vadd.f32 %v76, %v77
    %v81 = vadd.f32 %v80, %v78
    %v82 = vadd.f32 %v81, %v79
    %v83 = vrot.slane %v82, 4
    %v84 = vadd.f32 %v82, %v83
    %v85 = vrot.slane %v84, 2
    %v86 = vadd.f32 %v84, %v85
    %v87 = vrot.slane %v86, 1
    %v88 = vadd.f32 %v86, %v87
    %89 = vst [vmem:[#allocation8] sm:$0x1] %v88
    // Predicated region
    $region26: #{tpu_custom_call.1} parent=1 // pred_check
      _
    $region27: #{tpu_custom_call.1} parent=1 // pred_check_branch
      %91 = sbr.rel (0) target = $region29
    $region28: #{tpu_custom_call.1} parent=1 // pred_region
      %s93 = ssub.s32 16, 16
      %94 = vsyncadd [#allocation4], %s93
      %s96 = sshll.u32 [#allocation8], 4
      %s97 = int_to_ptr.vmem [resolvable:$true] %s96
      %99 = dma.vmem_to_hbm [thread:$0]  %s97, 16, %s3, [#allocation4]
    $region29: #{tpu_custom_call.1} parent=1 // pred_fallthru
      _
    // Predicated region
    $region30: #{tpu_custom_call.1} parent=1 // pred_check
      _
    $region31: #{tpu_custom_call.1} parent=1 // pred_check_branch
      %101 = sbr.rel (0) target = $region33
    $region32: #{tpu_custom_call.1} parent=1 // pred_region
      %102 = dma.done [#allocation4], 16
    $region33: #{tpu_custom_call.1} parent=1 // pred_fallthru
      _
    %103 = vsyncpa [#allocation3], 1
    %104 = vsyncpa [#allocation6], 1
    %105 = vsyncpa [#allocation4], 1

</llo_original>
